<compile_context>
chip_gen: v5e
topology: v5e:2x2
jax: 0.10.0
libtpu: 0.0.40
codegen_flags: <defaults>
</compile_context>

<pallas_src>
import functools
import math

import jax
import jax.numpy as jnp
from jax.experimental import pallas as pl
from jax.experimental.pallas import tpu as pltpu

_SQRT_2_OVER_PI = math.sqrt(2.0 / math.pi)
_GELU_A = 0.044715


def _gelu_kernel(x_ref, o_ref, *, compute_dtype):
    x = x_ref[...].astype(compute_dtype)
    c = jnp.asarray(_SQRT_2_OVER_PI, compute_dtype)
    a = jnp.asarray(_GELU_A, compute_dtype)
    half = jnp.asarray(0.5, compute_dtype)
    one = jnp.asarray(1.0, compute_dtype)
    x2 = x * x
    inner = c * (x * (one + a * x2))      # == sqrt(2/pi) * (x + 0.044715*x^3)
    t = jnp.tanh(inner)                   # EUP slot
    y = x * (half + half * t)             # == 0.5 * x * (1 + tanh(inner))
    o_ref[...] = y.astype(o_ref.dtype)


@functools.lru_cache(maxsize=1)
def _hw_params():
    """(target_block_bytes, vmem_limit_cap) chosen per TPU generation."""
    vmem_cap = None
    try:
        vmem_cap = int(getattr(pltpu.get_tpu_info(), "vmem_capacity_bytes"))
    except Exception:
        vmem_cap = None
    if vmem_cap is not None and vmem_cap > 96 * 1024 * 1024:
        # v5e / v6e: 128 MiB physical VMEM -> bigger tiles, generous limit.
        return 16 * 1024 * 1024, 96 * 1024 * 1024
    # v7x (64 MiB physical VMEM per TC) or unknown: stay conservative.
    return 8 * 1024 * 1024, 56 * 1024 * 1024


def _choose_layout(n):
    """Return (pad, rows, lanes) for a lane-dense slab covering n elements."""
    # Prefer wide lanes (>= 1024): lane-dense output is the biggest store lever.
    for lanes in (8192, 4096, 2048, 1024):
        if n % lanes == 0:
            return 0, n // lanes, lanes
    # n % 1024 != 0 but still lane-aligned: narrower (yet unmasked) slab with
    # ZERO padding -> avoids two extra full HBM passes (pad + output slice).
    for lanes in (512, 256, 128):
        if n % lanes == 0:
            return 0, n // lanes, lanes
    # Truly ragged (n % 128 != 0): pad up to a multiple of 1024 so the slab is
    # wide.  This rare path costs ~2 extra HBM passes; production shapes should
    # keep numel % 1024 == 0.
    pad = (-n) % 1024
    n_p = n + pad
    for lanes in (8192, 4096, 2048, 1024):
        if n_p % lanes == 0:
            return pad, n_p // lanes, lanes
    return pad, n_p // 1024, 1024  # defensive fallback (unreachable)


@jax.jit
def gelu_pallas(x):
    orig_shape = x.shape
    n = x.size
    if n == 0:
        return x
    itemsize = jnp.dtype(x.dtype).itemsize
    target_block_bytes, vmem_limit_cap = _hw_params()

    x1d = x.reshape(-1)                       # free for a contiguous input
    pad, rows, lanes = _choose_layout(n)
    if pad:
        x1d = jnp.pad(x1d, (0, pad))          # rare ragged path only
    x2d = x1d.reshape(rows, lanes)

    # Row tile: ~target_block_bytes per array, rounded to the native sublane
    # packing (8 rows for 4-byte, 16 for 2-byte, 32 for 1-byte dtypes).
    sub = max(8, 32 // itemsize)
    row_bytes = lanes * itemsize
    br = max(1, target_block_bytes // row_bytes)
    br = min(br, rows)
    if rows >= sub:
        br = max(sub, (br // sub) * sub)
    # v7x has 2 TensorCores: keep >= 2 grid steps whenever the slab allows so
    # the "parallel" axis can be split across both cores.
    if pl.cdiv(rows, br) < 2 and rows >= 2 * sub:
        br = ((pl.cdiv(rows, 2) + sub - 1) // sub) * sub
    grid = (pl.cdiv(rows, br),)

    tile_bytes = br * lanes * itemsize
    # Double-buffered input + output tiles plus headroom, capped per chip.
    vmem_limit = int(min(vmem_limit_cap,
                         max(16 * 1024 * 1024, 4 * tile_bytes + 4 * 1024 * 1024)))

    # bf16 computes natively (v6e/v7x bf16 VPU/EUP); everything else in f32.
    compute_dtype = jnp.bfloat16 if x.dtype == jnp.bfloat16 else jnp.float32

    out2d = pl.pallas_call(
        functools.partial(_gelu_kernel, compute_dtype=compute_dtype),
        out_shape=jax.ShapeDtypeStruct((rows, lanes), x.dtype),
        grid_spec=pltpu.PrefetchScalarGridSpec(
            num_scalar_prefetch=0,
            grid=grid,
            in_specs=[pl.BlockSpec((br, lanes), lambda i: (i, 0))],
            out_specs=pl.BlockSpec((br, lanes), lambda i: (i, 0)),
        ),
        compiler_params=pltpu.CompilerParams(
            dimension_semantics=("parallel",),
            vmem_limit_bytes=vmem_limit,
        ),
        cost_estimate=pl.CostEstimate(
            flops=9 * n,
            transcendentals=n,
            bytes_accessed=2 * n * itemsize,
        ),
    )(x2d)

    out1d = out2d.reshape(-1)
    if pad:
        out1d = out1d[:n]
    return out1d.reshape(orig_shape)


def gelu_ref(x):
    # Same tanh-approximation as the PyTorch module (not the erf-based GELU).
    xf = x.astype(jnp.float32)
    y = 0.5 * xf * (1.0 + jnp.tanh(_SQRT_2_OVER_PI * (xf + 0.044715 * xf ** 3)))
    return y.astype(x.dtype)


if __name__ == "__main__":
    key = jax.random.PRNGKey(0)

    # Shape implied by the module's typical use (batch, seq, hidden).
    batch, seq, hidden = 2, 8, 32
    x = jax.random.normal(key, (batch, seq, hidden), dtype=jnp.float32)
    out = gelu_pallas(x)
    jax.block_until_ready(out)
    assert out.shape == x.shape and out.dtype == x.dtype
    assert jnp.allclose(out, gelu_ref(x), atol=1e-5, rtol=1e-5)

    # Secondary checks: multi-block f32 slab and the native-bf16 compute path.
    x2 = jax.random.normal(jax.random.PRNGKey(1), (4, 128, 256), dtype=jnp.float32)
    out2 = gelu_pallas(x2)
    jax.block_until_ready(out2)
    assert jnp.allclose(out2, gelu_ref(x2), atol=1e-5, rtol=1e-5)

    xb = x2.astype(jnp.bfloat16)
    outb = gelu_pallas(xb)
    jax.block_until_ready(outb)
    assert outb.shape == xb.shape and outb.dtype == jnp.bfloat16
    assert jnp.allclose(outb.astype(jnp.float32),
                        gelu_ref(xb).astype(jnp.float32),
                        atol=2e-2, rtol=5e-2)

    print("KERNEL_OK")
</pallas_src>

<mosaic_0001>
module attributes {stable_mosaic.version = 11 : i64} {
  func.func @_gelu_kernel(%arg0: i32, %arg1: memref<1x512xf32, #tpu.memory_space<vmem>>, %arg2: memref<1x512xf32, #tpu.memory_space<vmem>>) attributes {dimension_semantics = [#tpu.dimension_semantics<parallel>], iteration_bounds = array<i64: 1>, scalar_prefetch = 0 : i64, scratch_operands = 0 : i64, tpu.core_type = #tpu.core_type<tc>, window_params = [{transform_indices = @transform_0, window_bounds = array<i64: 1, 512>}, {transform_indices = @transform_1, window_bounds = array<i64: 1, 512>}]} {
    %c0 = arith.constant 0 : index
    %c0_0 = arith.constant 0 : index
    %0 = vector.load %arg1[%c0, %c0_0] : memref<1x512xf32, #tpu.memory_space<vmem>>, vector<1x512xf32>
    %1 = arith.mulf %0, %0 : vector<1x512xf32>
    %cst = arith.constant 4.471500e-02 : f32
    %2 = vector.broadcast %cst : f32 to vector<1x512xf32>
    %3 = arith.mulf %2, %1 : vector<1x512xf32>
    %cst_1 = arith.constant 1.000000e+00 : f32
    %4 = vector.broadcast %cst_1 : f32 to vector<1x512xf32>
    %5 = arith.addf %4, %3 : vector<1x512xf32>
    %6 = arith.mulf %0, %5 : vector<1x512xf32>
    %cst_2 = arith.constant 0.797884583 : f32
    %7 = vector.broadcast %cst_2 : f32 to vector<1x512xf32>
    %8 = arith.mulf %7, %6 : vector<1x512xf32>
    %9 = math.tanh %8 : vector<1x512xf32>
    %cst_3 = arith.constant 5.000000e-01 : f32
    %10 = vector.broadcast %cst_3 : f32 to vector<1x512xf32>
    %11 = arith.mulf %10, %9 : vector<1x512xf32>
    %cst_4 = arith.constant 5.000000e-01 : f32
    %12 = vector.broadcast %cst_4 : f32 to vector<1x512xf32>
    %13 = arith.addf %12, %11 : vector<1x512xf32>
    %14 = arith.mulf %0, %13 : vector<1x512xf32>
    %c0_5 = arith.constant 0 : index
    %c0_6 = arith.constant 0 : index
    %15 = vector.load %arg2[%c0_5, %c0_6] : memref<1x512xf32, #tpu.memory_space<vmem>>, vector<1x512xf32>
    tpu.vector_store %arg2[%c0_5, %c0_6], %14 {strides = array<i32>} : memref<1x512xf32, #tpu.memory_space<vmem>>, vector<1x512xf32>,
    return
  }
  func.func @transform_0(%arg0: i32) -> (i32, i32) {
    %c0_i32 = arith.constant 0 : i32
    %c0_i32_0 = arith.constant 0 : i32
    return %arg0, %c0_i32 : i32, i32
  }
  func.func @transform_1(%arg0: i32) -> (i32, i32) {
    %c0_i32 = arith.constant 0 : i32
    %c0_i32_0 = arith.constant 0 : i32
    return %arg0, %c0_i32 : i32, i32
  }
}

</mosaic_0001>

<llo_original>
// kernel: gelu_pallas.1
$region0: #{gelu_pallas.1}
  #allocation0 [shape = 'u32[]', space=smem, size = 0x4, offset = 0x4, fixed_abs, tag = 'smem constant byte address 0x4 - core index']
  #allocation1 [shape = 'u32[72,128]{1,0:T(1,128)}', space=vmem, size = 0x9000, scoped, tag = 'internal scratch']
  %s0 = inlined_call_operand.vmem [shape: f32[1,512], index: 0, kind: input, shape index: {}]
  %s1 = inlined_call_operand.vmem [shape: f32[1,512], index: 1, kind: output, shape index: {}]
  %s2 = sld [smem:[#allocation0]]
  $region14: #{gelu_pallas.1} parent=0
    _
  %s4 = ssub.s32 1, %s2
  %s5 = scalar_select 0, %s4, %s2
  // Predicated region
  $region2: #{gelu_pallas.1} parent=0 // pred_check
    _
  $region3: #{gelu_pallas.1} parent=0 // pred_check_branch
    %7 = sbr.rel (0) target = $region5
  $region4: #{gelu_pallas.1} parent=0 // pred_region
    _
  $region5: #{gelu_pallas.1} parent=0 // pred_fallthru
    _
  %v8 = vld [vmem:[%s0] sm:$0xf]
  %v9 = vmul.f32 %v8, %v8
  %v10 = vmul.f32 %v9, 0.044715
  %v11 = vadd.f32 %v10, 1.0
  %v12 = vmul.f32 %v8, %v11
  %v13 = vmul.f32 %v12, 0.7978846
  %v14 = vtanh.pop %v13
  %v15 = vmul.f32 %v14, 0.5
  %v16 = vadd.f32 %v15, 0.5
  %v17 = vmul.f32 %v8, %v16
  %v18 = vlaneseq
  %vm19 = vcmp.ge.s32.totalorder %v18, 0
  %vm20 = vcmp.lt.s32.totalorder %v18, 512
  %vm21 = vmand %vm19, %vm20
  %22 = vst.msk [vmem:[%s1] sm:$0xf] %vm21, %v17
  // Predicated region
  $region6: #{gelu_pallas.1} parent=0 // pred_check
    _
  $region7: #{gelu_pallas.1} parent=0 // pred_check_branch
    %24 = sbr.rel (0) target = $region9
  $region8: #{gelu_pallas.1} parent=0 // pred_region
    _
  $region9: #{gelu_pallas.1} parent=0 // pred_fallthru
    _
  // Predicated region
  $region10: #{gelu_pallas.1} parent=0 // pred_check
    _
  $region11: #{gelu_pallas.1} parent=0 // pred_check_branch
    %26 = sbr.rel (0) target = $region13
  $region12: #{gelu_pallas.1} parent=0 // pred_region
    _
  $region13: #{gelu_pallas.1} parent=0 // pred_fallthru
    _

</llo_original>
